<compile_context>
chip_gen: v7x
topology: tpu7x:2x2x1
jax: 0.10.0
libtpu: 0.0.40
codegen_flags: <defaults>
</compile_context>

<pallas_src>
import functools
import math

import jax
import jax.numpy as jnp
from jax import lax
from jax.experimental import pallas as pl
from jax.experimental.pallas import tpu as pltpu

_NEG = -1e30  # effectively -inf, but finite so masked logsumexp stays NaN-free


def _sinkhorn_kernel(x_ref, yt_ref, cost_ref, pi_ref, c_ref, *,
                     eps, max_iter, thresh, n_valid, m_valid):
    x = x_ref[...].astype(jnp.float32)        # (N_pad, D)
    yt = yt_ref[...].astype(jnp.float32)      # (D, M_pad)  -- y pre-transposed in wrapper
    n_pad, _d = x.shape
    m_pad = yt.shape[1]

    # Cost matrix (p=2): ||x_i - y_j||^2 = ||x_i||^2 + ||y_j||^2 - 2 <x_i, y_j>
    x2 = jnp.sum(x * x, axis=1, keepdims=True)                  # (N_pad, 1)
    y2 = jnp.sum(yt * yt, axis=0, keepdims=True)                # (1, M_pad)
    xy = jnp.dot(x, yt, preferred_element_type=jnp.float32)     # MXU, one shot
    C = x2 + y2 - 2.0 * xy                                      # (N_pad, M_pad)
    c_ref[...] = C

    # Hoist 1/eps and the negation: the loop carries M = (-C + u + v)/eps directly.
    K = C * jnp.float32(-1.0 / eps)
    pad_rows = n_pad != n_valid
    pad_cols = m_pad != m_valid
    if pad_rows or pad_cols:
        valid = jnp.logical_and(
            lax.broadcasted_iota(jnp.int32, (n_pad, m_pad), 0) < n_valid,
            lax.broadcasted_iota(jnp.int32, (n_pad, m_pad), 1) < m_valid)
        K = jnp.where(valid, K, jnp.float32(_NEG))
    if pad_rows:
        row_valid = lax.broadcasted_iota(jnp.int32, (n_pad, 1), 0) < n_valid
    if pad_cols:
        col_valid = lax.broadcasted_iota(jnp.int32, (1, m_pad), 1) < m_valid

    log_mu = jnp.float32(math.log(1.0 / n_valid + 1e-8))   # mu = 1/N (uniform)
    log_nu = jnp.float32(math.log(1.0 / m_valid + 1e-8))   # nu = 1/M (uniform)

    def lse_rows(a):   # stable logsumexp over lanes (axis=-1) -> (N_pad, 1)
        m = jnp.max(a, axis=1, keepdims=True)
        return m + jnp.log(jnp.sum(jnp.exp(a - m), axis=1, keepdims=True))

    def lse_cols(a):   # stable logsumexp over sublanes (axis=-2) -> (1, M_pad)
        m = jnp.max(a, axis=0, keepdims=True)
        return m + jnp.log(jnp.sum(jnp.exp(a - m), axis=0, keepdims=True))

    def cond(carry):
        it, err, _ = carry
        return jnp.logical_and(it < max_iter, err >= thresh)

    def body(carry):
        it, _, m_cur = carry
        du = log_mu - lse_rows(m_cur)            # = (u_new - u)/eps, shape (N_pad, 1)
        if pad_rows:
            du = jnp.where(row_valid, du, 0.0)
        m1 = m_cur + du                          # M(C, u_new, v), incremental update
        dv = log_nu - lse_cols(m1)               # = (v_new - v)/eps, shape (1, M_pad)
        if pad_cols:
            dv = jnp.where(col_valid, dv, 0.0)
        err = jnp.float32(eps) * jnp.sum(jnp.abs(du))   # == sum_i |u_new - u| (this batch)
        return it + 1, err, m1 + dv

    carry0 = (jnp.array(0, jnp.int32), jnp.array(jnp.inf, jnp.float32), K)
    _, _, m_fin = lax.while_loop(cond, body, carry0)

    pi = jnp.exp(m_fin)                          # padded entries: exp(~ -1e30) == 0
    pi_ref[...] = pi
    cost_ref[...] = jnp.sum(pi * C, axis=(0, 1), keepdims=True)   # (1, 1)


def _round_up(n, m):
    return ((n + m - 1) // m) * m


def sinkhorn_distance(x, y, *, eps=0.1, max_iter=100, reduction='none', thresh=0.1):
    """Pallas TPU implementation of SinkhornDistance.forward."""
    squeeze_batch = False
    if x.ndim == 2:           # unbatched path of the PyTorch module
        x, y = x[None], y[None]
        squeeze_batch = True
    assert x.ndim == 3 and y.ndim == 3 and x.shape[0] == y.shape[0]
    B, N, D = x.shape
    M = y.shape[1]
    assert y.shape[2] == D

    # Pad for dense sublane (N -> mult of 8) / lane (M -> mult of 128) layout.
    n_pad = _round_up(N, 8)
    m_pad = _round_up(M, 128)
    x_p = jnp.pad(x, ((0, 0), (0, n_pad - N), (0, 0))) if n_pad != N else x
    y_t = jnp.swapaxes(y, 1, 2)                                   # (B, D, M): MXU-natural
    if m_pad != M:
        y_t = jnp.pad(y_t, ((0, 0), (0, 0), (0, m_pad - M)))

    kernel = functools.partial(
        _sinkhorn_kernel, eps=float(eps), max_iter=int(max_iter),
        thresh=float(thresh), n_valid=N, m_valid=M)

    # Per-batch VMEM budget: double-buffered pi/C outputs + inputs + ~8 live (N,M) temps.
    nm_b = n_pad * m_pad * 4
    in_b = (n_pad * D + D * m_pad) * 4
    vmem_limit = int(min(max(12 * nm_b + 4 * in_b + (2 << 20), 32 << 20), 100 << 20))

    cost, pi, C = pl.pallas_call(
        kernel,
        grid=(B,),
        in_specs=[
            pl.BlockSpec((None, n_pad, D), lambda b: (b, 0, 0)),
            pl.BlockSpec((None, D, m_pad), lambda b: (b, 0, 0)),
        ],
        out_specs=(
            pl.BlockSpec((None, 1, 1), lambda b: (b, 0, 0)),
            pl.BlockSpec((None, n_pad, m_pad), lambda b: (b, 0, 0)),
            pl.BlockSpec((None, n_pad, m_pad), lambda b: (b, 0, 0)),
        ),
        out_shape=(
            jax.ShapeDtypeStruct((B, 1, 1), jnp.float32),
            jax.ShapeDtypeStruct((B, n_pad, m_pad), jnp.float32),
            jax.ShapeDtypeStruct((B, n_pad, m_pad), jnp.float32),
        ),
        compiler_params=pltpu.CompilerParams(
            dimension_semantics=("parallel",),
            vmem_limit_bytes=vmem_limit,
        ),
    )(x_p, y_t)

    cost = cost[:, 0, 0]                   # (B,)  -- matches torch reduction='none'
    pi = pi[:, :N, :M]
    C = C[:, :N, :M]
    if squeeze_batch:
        cost, pi, C = cost[0], pi[0], C[0]
    if reduction == 'mean':
        cost = jnp.mean(cost)
    elif reduction == 'sum':
        cost = jnp.sum(cost)
    return cost, pi, C


if __name__ == "__main__":
    key = jax.random.PRNGKey(0)
    kx, ky = jax.random.split(key)
    B, N, M, D = 2, 16, 16, 8
    x = jax.random.normal(kx, (B, N, D), dtype=jnp.float32)
    y = jax.random.normal(ky, (B, M, D), dtype=jnp.float32)

    cost, pi, C = sinkhorn_distance(x, y, eps=0.1, max_iter=100, reduction='none')
    jax.block_until_ready((cost, pi, C))

    assert cost.shape == (B,)
    assert pi.shape == (B, N, M)
    assert C.shape == (B, N, M)
    assert bool(jnp.all(jnp.isfinite(cost)))
    assert bool(jnp.all(jnp.isfinite(pi)))
    assert bool(jnp.all(jnp.isfinite(C)))
    # After the final column (v) update every column marginal equals nu = 1/M,
    # so the total transport-plan mass is ~1 (also validates the padding masks).
    assert bool(jnp.all(jnp.abs(jnp.sum(pi, axis=(1, 2)) - 1.0) < 1e-2))
    print("KERNEL_OK")
</pallas_src>

<mosaic_0001>
module attributes {stable_mosaic.version = 11 : i64} {
  func.func @_sinkhorn_kernel(%arg0: i32, %arg1: memref<1x16x8xf32, #tpu.memory_space<vmem>>, %arg2: memref<1x8x128xf32, #tpu.memory_space<vmem>>, %arg3: memref<1x1x1xf32, #tpu.memory_space<vmem>>, %arg4: memref<1x16x128xf32, #tpu.memory_space<vmem>>, %arg5: memref<1x16x128xf32, #tpu.memory_space<vmem>>) attributes {dimension_semantics = [#tpu.dimension_semantics<parallel>], iteration_bounds = array<i64: 2>, scalar_prefetch = 0 : i64, scratch_operands = 0 : i64, tpu.core_type = #tpu.core_type<tc>, window_params = [{transform_indices = @transform_0, window_bounds = array<i64: 1, 16, 8>}, {transform_indices = @transform_1, window_bounds = array<i64: 1, 8, 128>}, {transform_indices = @transform_2, window_bounds = array<i64: 1, 1, 1>}, {transform_indices = @transform_3, window_bounds = array<i64: 1, 16, 128>}, {transform_indices = @transform_4, window_bounds = array<i64: 1, 16, 128>}]} {
    %c0 = arith.constant 0 : index
    %c0_0 = arith.constant 0 : index
    %c0_1 = arith.constant 0 : index
    %0 = vector.load %arg1[%c0, %c0_0, %c0_1] : memref<1x16x8xf32, #tpu.memory_space<vmem>>, vector<1x16x8xf32>
    %1 = vector.shape_cast %0 : vector<1x16x8xf32> to vector<16x8xf32>
    %c0_2 = arith.constant 0 : index
    %c0_3 = arith.constant 0 : index
    %c0_4 = arith.constant 0 : index
    %2 = vector.load %arg2[%c0_2, %c0_3, %c0_4] : memref<1x8x128xf32, #tpu.memory_space<vmem>>, vector<1x8x128xf32>
    %3 = vector.shape_cast %2 : vector<1x8x128xf32> to vector<8x128xf32>
    %4 = arith.mulf %1, %1 : vector<16x8xf32>
    %cst = arith.constant dense<0.000000e+00> : vector<16xf32>
    %5 = vector.multi_reduction <add>, %4, %cst [1] : vector<16x8xf32> to vector<16xf32>
    %6 = vector.shape_cast %5 : vector<16xf32> to vector<16x1xf32>
    %7 = arith.mulf %3, %3 : vector<8x128xf32>
    %cst_5 = arith.constant dense<0.000000e+00> : vector<128xf32>
    %8 = vector.multi_reduction <add>, %7, %cst_5 [0] : vector<8x128xf32> to vector<128xf32>
    %9 = vector.shape_cast %8 : vector<128xf32> to vector<1x128xf32>
    %cst_6 = arith.constant dense<0.000000e+00> : vector<16x128xf32>
    %10 = tpu.matmul %1, %3, %cst_6 {dimension_numbers = #tpu.dot_dimension_numbers<[1], [0], [0], [1], [0, 0, 1, 1], [], []>} : vector<16x8xf32>, vector<8x128xf32>, vector<16x128xf32> -> vector<16x128xf32>
    %11 = vector.broadcast %6 : vector<16x1xf32> to vector<16x128xf32>
    %12 = vector.broadcast %9 : vector<1x128xf32> to vector<16x128xf32>
    %13 = arith.addf %11, %12 : vector<16x128xf32>
    %cst_7 = arith.constant 2.000000e+00 : f32
    %14 = vector.broadcast %cst_7 : f32 to vector<16x128xf32>
    %15 = arith.mulf %14, %10 : vector<16x128xf32>
    %16 = arith.subf %13, %15 : vector<16x128xf32>
    %c0_8 = arith.constant 0 : index
    %c0_9 = arith.constant 0 : index
    %c0_10 = arith.constant 0 : index
    %17 = vector.load %arg5[%c0_8, %c0_9, %c0_10] : memref<1x16x128xf32, #tpu.memory_space<vmem>>, vector<1x16x128xf32>
    %18 = vector.shape_cast %17 : vector<1x16x128xf32> to vector<16x128xf32>
    %19 = vector.shape_cast %16 : vector<16x128xf32> to vector<1x16x128xf32>
    tpu.vector_store %arg5[%c0_8, %c0_9, %c0_10], %19 {strides = array<i32>} : memref<1x16x128xf32, #tpu.memory_space<vmem>>, vector<1x16x128xf32>,
    %cst_11 = arith.constant -1.000000e+01 : f32
    %20 = vector.broadcast %cst_11 : f32 to vector<16x128xf32>
    %21 = arith.mulf %16, %20 : vector<16x128xf32>
    %22 = tpu.iota {dimensions = array<i32: 0>} : vector<16x128xi32>
    %c16_i32 = arith.constant 16 : i32
    %23 = vector.broadcast %c16_i32 : i32 to vector<16x128xi32>
    %24 = arith.cmpi slt, %22, %23 : vector<16x128xi32>
    %25 = tpu.iota {dimensions = array<i32: 1>} : vector<16x128xi32>
    %c16_i32_12 = arith.constant 16 : i32
    %26 = vector.broadcast %c16_i32_12 : i32 to vector<16x128xi32>
    %27 = arith.cmpi slt, %25, %26 : vector<16x128xi32>
    %28 = arith.andi %24, %27 : vector<16x128xi1>
    %cst_13 = arith.constant -1.000000e+30 : f32
    %29 = vector.broadcast %cst_13 : f32 to vector<16x128xf32>
    %30 = arith.select %28, %21, %29 : vector<16x128xi1>, vector<16x128xf32>
    %31 = tpu.iota {dimensions = array<i32: 1>} : vector<1x128xi32>
    %c16_i32_14 = arith.constant 16 : i32
    %32 = vector.broadcast %c16_i32_14 : i32 to vector<1x128xi32>
    %33 = arith.cmpi slt, %31, %32 : vector<1x128xi32>
    %cst_15 = arith.constant -2.77258849 : f32
    %cst_16 = arith.constant -2.77258849 : f32
    %c0_i32 = arith.constant 0 : i32
    %cst_17 = arith.constant 0x7F800000 : f32
    %34:3 = scf.while (%arg6 = %c0_i32, %arg7 = %cst_17, %arg8 = %30) : (i32, f32, vector<16x128xf32>) -> (i32, f32, vector<16x128xf32>) {
      %c100_i32 = arith.constant 100 : i32
      %48 = arith.cmpi slt, %arg6, %c100_i32 : i32
      %cst_25 = arith.constant 1.000000e-01 : f32
      %49 = arith.cmpf oge, %arg7, %cst_25 : f32
      %50 = arith.andi %48, %49 : i1
      scf.condition(%50) %arg6, %arg7, %arg8 : i32, f32, vector<16x128xf32>
    } do {
    ^bb0(%arg6: i32, %arg7: f32, %arg8: vector<16x128xf32>):
      %cst_25 = arith.constant dense<0xFF800000> : vector<16xf32>
      %48 = vector.multi_reduction <maximumf>, %arg8, %cst_25 [1] : vector<16x128xf32> to vector<16xf32>
      %49 = vector.shape_cast %48 : vector<16xf32> to vector<16x1xf32>
      %50 = vector.broadcast %49 : vector<16x1xf32> to vector<16x128xf32>
      %51 = arith.subf %arg8, %50 : vector<16x128xf32>
      %52 = math.exp %51 : vector<16x128xf32>
      %cst_26 = arith.constant dense<0.000000e+00> : vector<16xf32>
      %53 = vector.multi_reduction <add>, %52, %cst_26 [1] : vector<16x128xf32> to vector<16xf32>
      %54 = vector.shape_cast %53 : vector<16xf32> to vector<16x1xf32>
      %55 = math.log %54 : vector<16x1xf32>
      %56 = arith.addf %49, %55 : vector<16x1xf32>
      %57 = vector.broadcast %cst_15 : f32 to vector<16x1xf32>
      %58 = arith.subf %57, %56 : vector<16x1xf32>
      %59 = vector.broadcast %58 : vector<16x1xf32> to vector<16x128xf32>
      %60 = arith.addf %arg8, %59 : vector<16x128xf32>
      %cst_27 = arith.constant dense<0xFF800000> : vector<128xf32>
      %61 = vector.multi_reduction <maximumf>, %60, %cst_27 [0] : vector<16x128xf32> to vector<128xf32>
      %62 = vector.shape_cast %61 : vector<128xf32> to vector<1x128xf32>
      %63 = vector.broadcast %62 : vector<1x128xf32> to vector<16x128xf32>
      %64 = arith.subf %60, %63 : vector<16x128xf32>
      %65 = math.exp %64 : vector<16x128xf32>
      %cst_28 = arith.constant dense<0.000000e+00> : vector<128xf32>
      %66 = vector.multi_reduction <add>, %65, %cst_28 [0] : vector<16x128xf32> to vector<128xf32>
      %67 = vector.shape_cast %66 : vector<128xf32> to vector<1x128xf32>
      %68 = math.log %67 : vector<1x128xf32>
      %69 = arith.addf %62, %68 : vector<1x128xf32>
      %70 = vector.broadcast %cst_16 : f32 to vector<1x128xf32>
      %71 = arith.subf %70, %69 : vector<1x128xf32>
      %cst_29 = arith.constant 0.000000e+00 : f32
      %72 = vector.broadcast %cst_29 : f32 to vector<1x128xf32>
      %73 = arith.select %33, %71, %72 : vector<1x128xi1>, vector<1x128xf32>
      %74 = math.absf %58 : vector<16x1xf32>
      %75 = vector.shape_cast %74 : vector<16x1xf32> to vector<1x16x1xf32>
      %cst_30 = arith.constant dense<0.000000e+00> : vector<1xf32>
      %76 = vector.multi_reduction <add>, %75, %cst_30 [1, 2] : vector<1x16x1xf32> to vector<1xf32>
      %77 = vector.shape_cast %76 : vector<1xf32> to vector<1x1x1xf32>
      %78 = vector.extract %77[0, 0, 0] : f32 from vector<1x1x1xf32>
      %cst_31 = arith.constant 1.000000e-01 : f32
      %79 = arith.mulf %cst_31, %78 : f32
      %c1_i32 = arith.constant 1 : i32
      %80 = arith.addi %arg6, %c1_i32 : i32
      %81 = vector.broadcast %73 : vector<1x128xf32> to vector<16x128xf32>
      %82 = arith.addf %60, %81 : vector<16x128xf32>
      scf.yield %80, %79, %82 : i32, f32, vector<16x128xf32>
    }
    %35 = math.exp %34#2 : vector<16x128xf32>
    %c0_18 = arith.constant 0 : index
    %c0_19 = arith.constant 0 : index
    %c0_20 = arith.constant 0 : index
    %36 = vector.load %arg4[%c0_18, %c0_19, %c0_20] : memref<1x16x128xf32, #tpu.memory_space<vmem>>, vector<1x16x128xf32>
    %37 = vector.shape_cast %36 : vector<1x16x128xf32> to vector<16x128xf32>
    %38 = vector.shape_cast %35 : vector<16x128xf32> to vector<1x16x128xf32>
    tpu.vector_store %arg4[%c0_18, %c0_19, %c0_20], %38 {strides = array<i32>} : memref<1x16x128xf32, #tpu.memory_space<vmem>>, vector<1x16x128xf32>,
    %39 = arith.mulf %35, %16 : vector<16x128xf32>
    %40 = vector.shape_cast %39 : vector<16x128xf32> to vector<1x16x128xf32>
    %cst_21 = arith.constant dense<0.000000e+00> : vector<1xf32>
    %41 = vector.multi_reduction <add>, %40, %cst_21 [1, 2] : vector<1x16x128xf32> to vector<1xf32>
    %42 = vector.shape_cast %41 : vector<1xf32> to vector<1x1x1xf32>
    %43 = vector.extract %42[0, 0, 0] : f32 from vector<1x1x1xf32>
    %44 = vector.broadcast %43 : f32 to vector<1x1xf32>
    %c0_22 = arith.constant 0 : index
    %c0_23 = arith.constant 0 : index
    %c0_24 = arith.constant 0 : index
    %45 = vector.load %arg3[%c0_22, %c0_23, %c0_24] : memref<1x1x1xf32, #tpu.memory_space<vmem>>, vector<1x1x1xf32>
    %46 = vector.shape_cast %45 : vector<1x1x1xf32> to vector<1x1xf32>
    %47 = vector.shape_cast %44 : vector<1x1xf32> to vector<1x1x1xf32>
    tpu.vector_store %arg3[%c0_22, %c0_23, %c0_24], %47 {strides = array<i32>} : memref<1x1x1xf32, #tpu.memory_space<vmem>>, vector<1x1x1xf32>,
    return
  }
  func.func @transform_0(%arg0: i32) -> (i32, i32, i32) {
    %c0_i32 = arith.constant 0 : i32
    %c0_i32_0 = arith.constant 0 : i32
    %c0_i32_1 = arith.constant 0 : i32
    return %arg0, %c0_i32, %c0_i32_0 : i32, i32, i32
  }
  func.func @transform_1(%arg0: i32) -> (i32, i32, i32) {
    %c0_i32 = arith.constant 0 : i32
    %c0_i32_0 = arith.constant 0 : i32
    %c0_i32_1 = arith.constant 0 : i32
    return %arg0, %c0_i32, %c0_i32_0 : i32, i32, i32
  }
  func.func @transform_2(%arg0: i32) -> (i32, i32, i32) {
    %c0_i32 = arith.constant 0 : i32
    %c0_i32_0 = arith.constant 0 : i32
    %c0_i32_1 = arith.constant 0 : i32
    return %arg0, %c0_i32, %c0_i32_0 : i32, i32, i32
  }
  func.func @transform_3(%arg0: i32) -> (i32, i32, i32) {
    %c0_i32 = arith.constant 0 : i32
    %c0_i32_0 = arith.constant 0 : i32
    %c0_i32_1 = arith.constant 0 : i32
    return %arg0, %c0_i32, %c0_i32_0 : i32, i32, i32
  }
  func.func @transform_4(%arg0: i32) -> (i32, i32, i32) {
    %c0_i32 = arith.constant 0 : i32
    %c0_i32_0 = arith.constant 0 : i32
    %c0_i32_1 = arith.constant 0 : i32
    return %arg0, %c0_i32, %c0_i32_0 : i32, i32, i32
  }
}

</mosaic_0001>

<llo_original>
// kernel: tpu_custom_call.1
$region0: #{tpu_custom_call.1}
  #allocation0 [shape = 'u32[]', space=smem, size = 0x4, offset = 0x4, fixed_abs, tag = 'smem constant byte address 0x4 - core index']
  #allocation1 [shape = 'u32[144,128]{1,0:T(1,128)}', space=vmem, size = 0x12000, scoped, tag = 'internal scratch']
  %s0 = inlined_call_operand.vmem [shape: f32[2,16,8], index: 0, kind: input, shape index: {}]
  %s1 = inlined_call_operand.vmem [shape: f32[2,8,128], index: 1, kind: input, shape index: {}]
  %s2 = inlined_call_operand.vmem [shape: f32[2,1,1], index: 2, kind: output, shape index: {0}]
  %s3 = inlined_call_operand.hbm [shape: f32[2,16,128], index: 3, kind: output, shape index: {1}]
  %s4 = inlined_call_operand.hbm [shape: f32[2,16,128], index: 4, kind: output, shape index: {2}]
  %5 = xla_tuple %s2, %s3, %s4
  %s6 = sld [smem:[#allocation0]]
  $region64: #{tpu_custom_call.1} parent=0
    _
  %s8 = ssub.s32 1, %s6
  %s9 = scalar_select 0, %s8, %s6
  $region1: #{tpu_custom_call.1} parent=0
    #allocation2 [shape = 'u8[16384]{0}', space=vmem, size = 0x4000, scoped, tag = 'output window, operand 1']
    #allocation3 [shape = 's32[2]{0}', space=sflag, size = 0x8, scoped, tag = 'scoped memory for tpu_custom_call.1']
    #allocation4 [shape = 'u8[16384]{0}', space=vmem, size = 0x4000, scoped, tag = 'output window, operand 2']
    #allocation5 [shape = 's32[2]{0}', space=sflag, size = 0x8, scoped, tag = 'scoped memory for tpu_custom_call.1']
    %10 = vsyncpa [#allocation3], 0
    %s11 = scalar_lea.sflag [#allocation3], 1
    %12 = vsyncpa %s11, 0
    %13 = vsyncpa [#allocation5], 0
    %s14 = scalar_lea.sflag [#allocation5], 1
    %15 = vsyncpa %s14, 0
    loop: start=0, step=1, limit=4
    $region2: #{tpu_custom_call.1} parent=1 // loop_pre_header
      _
    $region3: #{tpu_custom_call.1} parent=1 // loop_header
      %s17 = sphi 0, %s21
      %p18 = scmp.ge.s32.totalorder %s17, 4
      %s27 = sphi 0, %s29
      %s30 = sphi 0, %s27
      %s31 = sphi 0, %s30
      %s47 = sphi 0, %s31
      %s53 = sphi 0, %s55
      %s56 = sphi 0, %s53
      %s57 = sphi 0, %s56
      %s73 = sphi 0, %s57
      %s79 = sphi 0, %s81
      %s82 = sphi 0, %s79
      %s83 = sphi 0, %s82
      %s99 = sphi 0, %s83
      %s105 = sphi 0, %s107
      %s108 = sphi 0, %s105
      %s109 = sphi 0, %s108
      %s125 = sphi 0, %s109
      %s131 = sphi 0, %s133
      %s134 = sphi 0, %s131
      %s135 = sphi 0, %s134
      %s151 = sphi 0, %s135
    $region4: #{tpu_custom_call.1} parent=1 // loop_header_branch
      %20 = sbr.rel (%p18) target = $region8
    $region5: #{tpu_custom_call.1} parent=1 // loop_body
      %s22 = ssub.s32 %s17, 1
      %s23 = ssub.s32 %s17, 2
      %s24 = sadd.s32 %s17, 1
      %s25 = ssub.s32 %s17, %s24
      %p26 = scmp.eq.s32.totalorder %s25, 0
      %s28 = sadd.s32 %s27, 1
      %s29 = scalar_select %p26, %s27, %s28
      %p32 = pneg %p26
      %p33 = scmp.eq.s32.totalorder %s17, 1
      %p34 = por %p32, %p33
      %p35 = scmp.ne.s32.totalorder %s27, %s30
      %p36 = scmp.eq.s32.totalorder %s17, 0
      %p37 = por %p35, %p36
      %p38 = scmp.ne.s32.totalorder %s27, %s30
      %p39 = scmp.eq.s32.totalorder %s22, 1
      %p40 = por %p38, %p39
      %p41 = scmp.ne.s32.totalorder %s30, %s31
      %p42 = scmp.eq.s32.totalorder %s22, 0
      %p43 = por %p41, %p42
      %p44 = scmp.ne.s32.totalorder %s30, %s31
      %p45 = scmp.eq.s32.totalorder %s23, 1
      %p46 = por %p44, %p45
      %p48 = scmp.ne.s32.totalorder %s31, %s47
      %p49 = scmp.eq.s32.totalorder %s23, 0
      %p50 = por %p48, %p49
      %s51 = ssub.s32 %s17, %s24
      %p52 = scmp.eq.s32.totalorder %s51, 0
      %s54 = sadd.s32 %s53, 1
      %s55 = scalar_select %p52, %s53, %s54
      %p58 = pneg %p52
      %p59 = scmp.eq.s32.totalorder %s17, 1
      %p60 = por %p58, %p59
      %p61 = scmp.ne.s32.totalorder %s53, %s56
      %p62 = scmp.eq.s32.totalorder %s17, 0
      %p63 = por %p61, %p62
      %p64 = scmp.ne.s32.totalorder %s53, %s56
      %p65 = scmp.eq.s32.totalorder %s22, 1
      %p66 = por %p64, %p65
      %p67 = scmp.ne.s32.totalorder %s56, %s57
      %p68 = scmp.eq.s32.totalorder %s22, 0
      %p69 = por %p67, %p68
      %p70 = scmp.ne.s32.totalorder %s56, %s57
      %p71 = scmp.eq.s32.totalorder %s23, 1
      %p72 = por %p70, %p71
      %p74 = scmp.ne.s32.totalorder %s57, %s73
      %p75 = scmp.eq.s32.totalorder %s23, 0
      %p76 = por %p74, %p75
      %s77 = ssub.s32 %s17, %s24
      %p78 = scmp.eq.s32.totalorder %s77, 0
      %s80 = sadd.s32 %s79, 1
      %s81 = scalar_select %p78, %s79, %s80
      %p84 = pneg %p78
      %p85 = scmp.eq.s32.totalorder %s17, 1
      %p86 = por %p84, %p85
      %p87 = scmp.ne.s32.totalorder %s79, %s82
      %p88 = scmp.eq.s32.totalorder %s17, 0
      %p89 = por %p87, %p88
      %p90 = scmp.ne.s32.totalorder %s79, %s82
      %p91 = scmp.eq.s32.totalorder %s22, 1
      %p92 = por %p90, %p91
      %p93 = scmp.ne.s32.totalorder %s82, %s83
      %p94 = scmp.eq.s32.totalorder %s22, 0
      %p95 = por %p93, %p94
      %p96 = scmp.ne.s32.totalorder %s82, %s83
      %p97 = scmp.eq.s32.totalorder %s23, 1
      %p98 = por %p96, %p97
      %p100 = scmp.ne.s32.totalorder %s83, %s99
      %p101 = scmp.eq.s32.totalorder %s23, 0
      %p102 = por %p100, %p101
      %s103 = ssub.s32 %s17, %s24
      %p104 = scmp.eq.s32.totalorder %s103, 0
      %s106 = sadd.s32 %s105, 1
      %s107 = scalar_select %p104, %s105, %s106
      %p110 = pneg %p104
      %p111 = scmp.eq.s32.totalorder %s17, 1
      %p112 = por %p110, %p111
      %p113 = scmp.ne.s32.totalorder %s105, %s108
      %p114 = scmp.eq.s32.totalorder %s17, 0
      %p115 = por %p113, %p114
      %p116 = scmp.ne.s32.totalorder %s105, %s108
      %p117 = scmp.eq.s32.totalorder %s22, 1
      %p118 = por %p116, %p117
      %p119 = scmp.ne.s32.totalorder %s108, %s109
      %p120 = scmp.eq.s32.totalorder %s22, 0
      %p121 = por %p119, %p120
      %p122 = scmp.ne.s32.totalorder %s108, %s109
      %p123 = scmp.eq.s32.totalorder %s23, 1
      %p124 = por %p122, %p123
      %p126 = scmp.ne.s32.totalorder %s109, %s125
      %p127 = scmp.eq.s32.totalorder %s23, 0
      %p128 = por %p126, %p127
      %s129 = ssub.s32 %s17, %s24
      %p130 = scmp.eq.s32.totalorder %s129, 0
      %s132 = sadd.s32 %s131, 1
      %s133 = scalar_select %p130, %s131, %s132
      %p136 = pneg %p130
      %p137 = scmp.eq.s32.totalorder %s17, 1
      %p138 = por %p136, %p137
      %p139 = scmp.ne.s32.totalorder %s131, %s134
      %p140 = scmp.eq.s32.totalorder %s17, 0
      %p141 = por %p139, %p140
      %p142 = scmp.ne.s32.totalorder %s131, %s134
      %p143 = scmp.eq.s32.totalorder %s22, 1
      %p144 = por %p142, %p143
      %p145 = scmp.ne.s32.totalorder %s134, %s135
      %p146 = scmp.eq.s32.totalorder %s22, 0
      %p147 = por %p145, %p146
      %p148 = scmp.ne.s32.totalorder %s134, %s135
      %p149 = scmp.eq.s32.totalorder %s23, 1
      %p150 = por %p148, %p149
      %p152 = scmp.ne.s32.totalorder %s135, %s151
      %p153 = scmp.eq.s32.totalorder %s23, 0
      %p154 = por %p152, %p153
      %p155 = scmp.le.s32.totalorder 1, %s17
      %p156 = scmp.lt.s32.totalorder %s17, 3
      %p157 = pnand %p155, %p156
      %p158 = pneg %p157
      // Predicated region
      $region9: #{tpu_custom_call.1} parent=5 // pred_check
        _
      $region10: #{tpu_custom_call.1} parent=5 // pred_check_branch
        %160 = sbr.rel (%p157) target = $region12
      $region11: #{tpu_custom_call.1} parent=5 // pred_region
        %s161 = ssub.s32 %s17, 1
      $region12: #{tpu_custom_call.1} parent=5 // pred_fallthru
        _
      %p162 = scmp.lt.s32.totalorder %s17, 2
      // Predicated region
      $region13: #{tpu_custom_call.1} parent=5 // pred_check
        %p163 = pneg %p162
      $region14: #{tpu_custom_call.1} parent=5 // pred_check_branch
        %165 = sbr.rel (%p163) target = $region16
      $region15: #{tpu_custom_call.1} parent=5 // pred_region
        // Predicated region
        $region17: #{tpu_custom_call.1} parent=15 // pred_check
          %p166 = pneg %p37
        $region18: #{tpu_custom_call.1} parent=15 // pred_check_branch
          %168 = sbr.rel (%p166) target = $region20
        $region19: #{tpu_custom_call.1} parent=15 // pred_region
          %p169 = scmp.lt.s32.totalorder %s17, 1
          %s170 = scalar_select %p169, %s17, 1
          %s171 = smul.addr %s170, 2
          %s172 = smul.addr %s171, 8
          %s173 = scalar_lea.vmem %s0, %s172
        $region20: #{tpu_custom_call.1} parent=15 // pred_fallthru
          _
        // Predicated region
        $region21: #{tpu_custom_call.1} parent=15 // pred_check
          %p174 = pneg %p63
        $region22: #{tpu_custom_call.1} parent=15 // pred_check_branch
          %176 = sbr.rel (%p174) target = $region24
        $region23: #{tpu_custom_call.1} parent=15 // pred_region
          %p177 = scmp.lt.s32.totalorder %s17, 1
          %s178 = scalar_select %p177, %s17, 1
          %s179 = smul.addr %s178, 8
          %s180 = scalar_lea.vmem %s1, %s179
        $region24: #{tpu_custom_call.1} parent=15 // pred_fallthru
          _
      $region16: #{tpu_custom_call.1} parent=5 // pred_fallthru
        _
      %p181 = scmp.le.s32.totalorder 1, %s17
      %p182 = scmp.lt.s32.totalorder %s17, 3
      %p183 = pnand %p181, %p182
      %p184 = pneg %p183
      // Predicated region
      $region25: #{tpu_custom_call.1} parent=5 // pred_check
        _
      $region26: #{tpu_custom_call.1} parent=5 // pred_check_branch
        %186 = sbr.rel (%p183) target = $region28
      $region27: #{tpu_custom_call.1} parent=5 // pred_region
        %s187 = ssub.s32 %s17, 1
        %p188 = scmp.lt.s32.totalorder %s22, 1
        %s189 = scalar_select %p188, %s22, 1
        %s190 = smul.addr %s189, 2
        %s191 = smul.addr %s190, 8
        %s192 = scalar_lea.vmem %s0, %s191
        %p193 = pneg %p43
        %p194 = pneg %p40
        %p195 = scmp.lt.s32.totalorder %s22, 1
        %s196 = scalar_select %p195, %s22, 1
        %s197 = smul.addr %s196, 8
        %s198 = scalar_lea.vmem %s1, %s197
        %p199 = pneg %p69
        %p200 = pneg %p66
        %p201 = pneg %p95
        %p202 = pneg %p92
        %p203 = scmp.lt.s32.totalorder %s22, 1
        %s204 = scalar_select %p203, %s22, 1
        %s205 = scalar_lea.vmem %s2, %s204
        %p206 = pneg %p121
        %p207 = pneg %p118
        %s208 = sand.u32 %s108, 1
        %s209 = scalar_lea.sflag [#allocation3], %s208
        %s210 = sand.u32 %s108, 1
        %s211 = smul.addr %s210, 16
        %s212 = scalar_lea.vmem [#allocation2], %s211
        %p213 = pneg %p147
        %p214 = pneg %p144
        %s215 = sand.u32 %s134, 1
        %s216 = scalar_lea.sflag [#allocation5], %s215
        %s217 = sand.u32 %s134, 1
        %s218 = smul.addr %s217, 16
        %s219 = scalar_lea.vmem [#allocation4], %s218
        %p220 = scmp.lt.s32.totalorder %s22, 1
        %s221 = scalar_select %p220, %s22, 1
        %s222 = smul.addr %s221, 2
        %s223 = smul.addr %s222, 8
        %s224 = scalar_lea.vmem %s0, %s223
        %p225 = scmp.lt.s32.totalorder %s22, 1
        %s226 = scalar_select %p225, %s22, 1
        %s227 = smul.addr %s226, 8
        %s228 = scalar_lea.vmem %s1, %s227
        %p229 = scmp.lt.s32.totalorder %s22, 1
        %s230 = scalar_select %p229, %s22, 1
        %s231 = scalar_lea.vmem %s2, %s230
        %v232 = vld [vmem:[%s224] sm:$0xff]
        %v233 = vld [vmem:[%s224 + $0x8] sm:$0xff]
        %v234 = vld [vmem:[%s228] sm:$0xff]
        %v235 = vmul.f32 %v232, %v232
        %v236 = vmul.f32 %v233, %v233
        %vm237 = vcmask 64512
        %v238 = vsel %vm237, %v235, 0.0
        %239 = vadd.xlane.f32.xlu0 %v238
        %v240 = vpop.xlane.xlu0 %239
        %v241 = vsel %vm237, %v236, 0.0
        %242 = vadd.xlane.f32.xlu0 %v241
        %v243 = vpop.xlane.xlu0 %242
        %v244 = vmul.f32 %v234, %v234
        %v245 = vrot.slane %v244, 4
        %v246 = vadd.f32 %v244, %v245
        %v247 = vrot.slane %v246, 2
        %v248 = vadd.f32 %v246, %v247
        %v249 = vrot.slane %v248, 1
        %v250 = vadd.f32 %v248, %v249
        %v252 = vsel %vm237, %v232, 0
        %v255 = vsel %vm237, %v233, 0
        %257 = vmatprep.subr.mxu0 0.0
        %258 = vmatpush1.msra.mxu0 %v234
        %259 = vmatprep.subr.mxu0 0.0
        %260 = vmatpush1.msra.mxu0 0.0
        %261 = vmatprep.subr.mxu0 0.0
        %262 = vmatpush1.msra.mxu0 0.0
        %263 = vmatprep.subr.mxu0 0.0
        %264 = vmatpush1.msra.mxu0 0.0
        %265 = vmatprep.subr.mxu0 0.0
        %266 = vmatpush1.msra.mxu0 0.0
        %267 = vmatprep.subr.mxu0 0.0
        %268 = vmatpush1.msra.mxu0 0.0
        %269 = vmatprep.subr.mxu0 0.0
        %270 = vmatpush1.msra.mxu0 0.0
        %271 = vmatprep.subr.mxu0 0.0
        %272 = vmatpush1.msra.mxu0 0.0
        %273 = vmatprep.subr.mxu0 0.0
        %274 = vmatpush1.msra.mxu0 0.0
        %275 = vmatprep.subr.mxu0 0.0
        %276 = vmatpush1.msra.mxu0 0.0
        %277 = vmatprep.subr.mxu0 0.0
        %278 = vmatpush1.msra.mxu0 0.0
        %279 = vmatprep.subr.mxu0 0.0
        %280 = vmatpush1.msra.mxu0 0.0
        %281 = vmatprep.subr.mxu0 0.0
        %282 = vmatpush1.msra.mxu0 0.0
        %283 = vmatprep.subr.mxu0 0.0
        %284 = vmatpush1.msra.mxu0 0.0
        %285 = vmatprep.subr.mxu0 0.0
        %286 = vmatpush1.msra.mxu0 0.0
        %287 = vmatprep.subr.mxu0 0.0
        %288 = vmatpush1.msra.mxu0 0.0
        %289 = vmatprep.subr.mxu0 0.0
        %290 = vmatpush1.msra.mxu0 0.0
        %291 = vmatprep.subr.mxu0 0.0
        %292 = vmatpush1.msra.mxu0 0.0
        %293 = vmatprep.subr.mxu0 0.0
        %294 = vmatpush1.msra.mxu0 0.0
        %295 = vmatprep.subr.mxu0 0.0
        %296 = vmatpush1.msra.mxu0 0.0
        %297 = vmatprep.subr.mxu0 0.0
        %298 = vmatpush1.msra.mxu0 0.0
        %299 = vmatprep.subr.mxu0 0.0
        %300 = vmatpush1.msra.mxu0 0.0
        %301 = vmatprep.subr.mxu0 0.0
        %302 = vmatpush1.msra.mxu0 0.0
        %303 = vmatprep.subr.mxu0 0.0
        %304 = vmatpush1.msra.mxu0 0.0
        %305 = vmatprep.subr.mxu0 0.0
        %306 = vmatpush1.msra.mxu0 0.0
        %307 = vmatprep.subr.mxu0 0.0
        %308 = vmatpush1.msra.mxu0 0.0
        %309 = vmatprep.subr.mxu0 0.0
        %310 = vmatpush1.msra.mxu0 0.0
        %311 = vmatprep.subr.mxu0 0.0
        %312 = vmatpush1.msra.mxu0 0.0
        %313 = vmatprep.subr.mxu0 0.0
        %314 = vmatpush1.msra.mxu0 0.0
        %315 = vmatprep.subr.mxu0 0.0
        %316 = vmatpush1.msra.mxu0 0.0
        %317 = vmatprep.subr.mxu0 0.0
        %318 = vmatpush1.msra.mxu0 0.0
        %319 = vmatprep.subr.mxu0 0.0
        %320 = vmatpush1.msra.mxu0 0.0
        %321 = vmatprep.mubr.f32.mxu0 0.0
        %322 = vmatmul.mubr.f32.gmra.mrb[0].mxu0 %v252
        %v323 = vpop.f32.mrb[0].mxu0
        %v324 = vadd.f32 0.0, %v323
        %v325 = vpop.f32.mrb[0].mxu0
        %326 = vmatprep.mubr.f32.mxu0 0.0
        %327 = vmatmul.mubr.f32.gmra.mrb[0].mxu0 %v255
        %v328 = vpop.f32.mrb[0].mxu0
        %v329 = vadd.f32 0.0, %v328
        %v330 = vpop.f32.mrb[0].mxu0
        %331 = vdwg.mxu0
        %v332 = vadd.f32 %v240, %v250
        %v333 = vadd.f32 %v243, %v250
        %v334 = vmul.f32 %v324, 2.0
        %v335 = vmul.f32 %v329, 2.0
        %v336 = vsub.f32 %v332, %v334
        %v337 = vsub.f32 %v333, %v335
        %338 = vst [vmem:[%s219] sm:$0xff] %v336
        %339 = vst [vmem:[%s219 + $0x8] sm:$0xff] %v337
        %v340 = vmul.f32 %v336, -10.0
        %v341 = vmul.f32 %v337, -10.0
        %v342 = vlaneseq
        %v343 = vshrl.u32 %v342, 7
        %v344 = vadd.s32 %v343, 8
        %vm345 = vcmp.lt.s32.totalorder %v343, 16
        %vm346 = vcmp.lt.s32.totalorder %v344, 16
        %v347 = vlaneseq
        %v348 = vand.u32 %v347, 127
        %vm349 = vcmp.lt.s32.totalorder %v348, 16
        %vm350 = vmand %vm345, %vm349
        %vm351 = vmand %vm346, %vm349
        %v352 = vsel %vm350, %v340, -1e+30
        %v353 = vsel %vm351, %v341, -1e+30
        // While loop
        $region29: #{tpu_custom_call.1} parent=27 // loop_pre_header
          _
        $region30: #{tpu_custom_call.1} parent=27 // loop_header
          %s355 = sphi 0, %s430
          %s356 = sphi inf, %s429
          %v357 = vphi %v352, %v431
          %v358 = vphi %v353, %v432
          %p359 = scmp.lt.s32.totalorder %s355, 100
          %p360 = scmp.ge.f32.partialorder %s356, 0.1
          %p361 = pnand %p359, %p360
          %p362 = pneg %p361
        $region31: #{tpu_custom_call.1} parent=27 // loop_header_branch
          %364 = sbr.rel (%p361) target = $region35
        $region32: #{tpu_custom_call.1} parent=27 // loop_body
          %365 = vmax.xlane.f32.xlu0 %v357
          %v366 = vpop.xlane.xlu0 %365
          %367 = vmax.xlane.f32.xlu0 %v358
          %v368 = vpop.xlane.xlu0 %367
          %v369 = vsub.f32 %v357, %v366
          %v370 = vsub.f32 %v358, %v368
          %v371 = vmul.f32 %v369, 1.442695
          %v372 = vpow.pop %v371
          %v373 = vmul.f32 %v370, 1.442695
          %v374 = vpow.pop %v373
          %375 = vadd.xlane.f32.xlu0 %v372
          %v376 = vpop.xlane.xlu0 %375
          %377 = vadd.xlane.f32.xlu0 %v374
          %v378 = vpop.xlane.xlu0 %377
          %v379 = vlog2.pop %v376
          %v380 = vmul.f32 %v379, 0.6931472
          %v381 = vlog2.pop %v378
          %v382 = vmul.f32 %v381, 0.6931472
          %v383 = vadd.f32 %v366, %v380
          %v384 = vadd.f32 %v368, %v382
          %v385 = vsub.f32 -2.7725885, %v383
          %v386 = vsub.f32 -2.7725885, %v384
          %v387 = vadd.f32 %v357, %v385
          %v388 = vadd.f32 %v358, %v386
          %v389 = vmax.f32 %v387, %v388
          %v390 = vrot.slane %v389, 4
          %v391 = vmax.f32 %v389, %v390
          %v392 = vrot.slane %v391, 2
          %v393 = vmax.f32 %v391, %v392
          %v394 = vrot.slane %v393, 1
          %v395 = vmax.f32 %v393, %v394
          %v396 = vsub.f32 %v387, %v395
          %v397 = vsub.f32 %v388, %v395
          %v398 = vmul.f32 %v396, 1.442695
          %v399 = vpow.pop %v398
          %v400 = vmul.f32 %v397, 1.442695
          %v401 = vpow.pop %v400
          %v402 = vadd.f32 %v399, %v401
          %v403 = vrot.slane %v402, 4
          %v404 = vadd.f32 %v402, %v403
          %v405 = vrot.slane %v404, 2
          %v406 = vadd.f32 %v404, %v405
          %v407 = vrot.slane %v406, 1
          %v408 = vadd.f32 %v406, %v407
          %v409 = vlog2.pop %v408
          %v410 = vmul.f32 %v409, 0.6931472
          %v411 = vadd.f32 %v395, %v410
          %v412 = vsub.f32 -2.7725885, %v411
          %v413 = vsel %vm349, %v412, 0.0
          %v414 = vand.u32 2147483647, %v385
          %v415 = vand.u32 2147483647, %v386
          %vm416 = vcmask 7168
          %v417 = vsel %vm416, %v414, 0.0
          %v418 = vsel %vm416, %v415, 0.0
          %v419 = vadd.f32 %v417, %v418
          %420 = vadd.xlane.f32.xlu0 %v419
          %v421 = vpop.xlane.xlu0 %420
          %v422 = vrot.slane %v421, 4
          %v423 = vadd.f32 %v421, %v422
          %v424 = vrot.slane %v423, 2
          %v425 = vadd.f32 %v423, %v424
          %v426 = vrot.slane %v425, 1
          %v427 = vadd.f32 %v425, %v426
          %s428 = vtos %v427
          %s429 = smul.f32 %s428, 0.1
          %s430 = sadd.s32 %s355, 1
          %v431 = vadd.f32 %v387, %v413
          %v432 = vadd.f32 %v388, %v413
        $region33: #{tpu_custom_call.1} parent=27 // loop_footer
          _
        $region34: #{tpu_custom_call.1} parent=27 // loop_footer_branch
          %354 = sbr.rel target = $region30
        $region35: #{tpu_custom_call.1} parent=27 // loop_exit
          _
        %v433 = vmul.f32 %v357, 1.442695
        %v434 = vpow.pop %v433
        %v435 = vmul.f32 %v358, 1.442695
        %v436 = vpow.pop %v435
        %437 = vst [vmem:[%s212] sm:$0xff] %v434
        %438 = vst [vmem:[%s212 + $0x8] sm:$0xff] %v436
        %v439 = vmul.f32 %v434, %v336
        %v440 = vmul.f32 %v436, %v337
        %v441 = vadd.f32 %v439, %v440
        %442 = vadd.xlane.f32.xlu0 %v441
        %v443 = vpop.xlane.xlu0 %442
        %v444 = vrot.slane %v443, 4
        %v445 = vadd.f32 %v443, %v444
        %v446 = vrot.slane %v445, 2
        %v447 = vadd.f32 %v445, %v446
        %v448 = vrot.slane %v447, 1
        %v449 = vadd.f32 %v447, %v448
        %s450 = vtos %v449
        %v451 = vstv %s450
        %vm452 = vcmask 0
        %453 = vst.msk [vmem:[%s231] sm:$0x1] %vm452, %v451
        %p454 = scmp.lt.s32.totalorder %s22, 1
        %s455 = scalar_select %p454, %s22, 1
        %s456 = scalar_lea.vmem %s2, %s455
        %s457 = sand.u32 %s108, 1
        %s458 = scalar_lea.sflag [#allocation3], %s457
        %s459 = sand.u32 %s108, 1
        %s460 = smul.addr %s459, 16
        %s461 = scalar_lea.vmem [#allocation2], %s460
        %s462 = sand.u32 %s134, 1
        %s463 = scalar_lea.sflag [#allocation5], %s462
        %s464 = sand.u32 %s134, 1
        %s465 = smul.addr %s464, 16
        %s466 = scalar_lea.vmem [#allocation4], %s465
        // Predicated region
        $region36: #{tpu_custom_call.1} parent=27 // pred_check
          %p467 = pneg %p92
        $region37: #{tpu_custom_call.1} parent=27 // pred_check_branch
          %469 = sbr.rel (%p467) target = $region39
        $region38: #{tpu_custom_call.1} parent=27 // pred_region
          _
        $region39: #{tpu_custom_call.1} parent=27 // pred_fallthru
          _
        // Predicated region
        $region40: #{tpu_custom_call.1} parent=27 // pred_check
          %p470 = pneg %p118
        $region41: #{tpu_custom_call.1} parent=27 // pred_check_branch
          %472 = sbr.rel (%p470) target = $region43
        $region42: #{tpu_custom_call.1} parent=27 // pred_region
          %s474 = ssub.s32 256, 256
          %475 = vsyncadd %s458, %s474
          %s476 = smul.addr %s22, 2
          %s477 = smul.addr %s476, 128
          %s478 = scalar_lea.hbm %s3, %s477
          %s479 = sshll.u32 %s461, 4
          %s480 = int_to_ptr.vmem [resolvable:$true] %s479
          %485 = dma.vmem_to_hbm [thread:$0]  %s480, 256, %s478, %s458, 128, 128, 8
        $region43: #{tpu_custom_call.1} parent=27 // pred_fallthru
          _
        // Predicated region
        $region44: #{tpu_custom_call.1} parent=27 // pred_check
          %p486 = pneg %p144
        $region45: #{tpu_custom_call.1} parent=27 // pred_check_branch
          %488 = sbr.rel (%p486) target = $region47
        $region46: #{tpu_custom_call.1} parent=27 // pred_region
          %s490 = ssub.s32 256, 256
          %491 = vsyncadd %s463, %s490
          %s492 = smul.addr %s22, 2
          %s493 = smul.addr %s492, 128
          %s494 = scalar_lea.hbm %s4, %s493
          %s495 = sshll.u32 %s466, 4
          %s496 = int_to_ptr.vmem [resolvable:$true] %s495
          %501 = dma.vmem_to_hbm [thread:$0]  %s496, 256, %s494, %s463, 128, 128, 8
        $region47: #{tpu_custom_call.1} parent=27 // pred_fallthru
          _
      $region28: #{tpu_custom_call.1} parent=5 // pred_fallthru
        _
      %p502 = scmp.le.s32.totalorder 2, %s17
      // Predicated region
      $region48: #{tpu_custom_call.1} parent=5 // pred_check
        %p503 = pneg %p502
      $region49: #{tpu_custom_call.1} parent=5 // pred_check_branch
        %505 = sbr.rel (%p503) target = $region51
      $region50: #{tpu_custom_call.1} parent=5 // pred_region
        %s506 = ssub.s32 %s17, 2
        // Predicated region
        $region52: #{tpu_custom_call.1} parent=50 // pred_check
          %p507 = pneg %p98
        $region53: #{tpu_custom_call.1} parent=50 // pred_check_branch
          %509 = sbr.rel (%p507) target = $region55
        $region54: #{tpu_custom_call.1} parent=50 // pred_region
          %p510 = scmp.lt.s32.totalorder %s23, 1
          %s511 = scalar_select %p510, %s23, 1
          %s512 = scalar_lea.vmem %s2, %s511
        $region55: #{tpu_custom_call.1} parent=50 // pred_fallthru
          _
        // Predicated region
        $region56: #{tpu_custom_call.1} parent=50 // pred_check
          %p513 = pneg %p124
        $region57: #{tpu_custom_call.1} parent=50 // pred_check_branch
          %515 = sbr.rel (%p513) target = $region59
        $region58: #{tpu_custom_call.1} parent=50 // pred_region
          %s516 = sand.u32 %s109, 1
          %s517 = scalar_lea.sflag [#allocation3], %s516
          %s518 = sand.u32 %s109, 1
          %s519 = smul.addr %s518, 16
          %s520 = scalar_lea.vmem [#allocation2], %s519
          %521 = dma.done %s517, 256
        $region59: #{tpu_custom_call.1} parent=50 // pred_fallthru
          _
        // Predicated region
        $region60: #{tpu_custom_call.1} parent=50 // pred_check
          %p522 = pneg %p150
        $region61: #{tpu_custom_call.1} parent=50 // pred_check_branch
          %524 = sbr.rel (%p522) target = $region63
        $region62: #{tpu_custom_call.1} parent=50 // pred_region
          %s525 = sand.u32 %s135, 1
          %s526 = scalar_lea.sflag [#allocation5], %s525
          %s527 = sand.u32 %s135, 1
          %s528 = smul.addr %s527, 16
          %s529 = scalar_lea.vmem [#allocation4], %s528
          %530 = dma.done %s526, 256
        $region63: #{tpu_custom_call.1} parent=50 // pred_fallthru
          _
      $region51: #{tpu_custom_call.1} parent=5 // pred_fallthru
        _
    $region6: #{tpu_custom_call.1} parent=1 // loop_footer
      %s21 = sadd.s32 1, %s17
    $region7: #{tpu_custom_call.1} parent=1 // loop_footer_branch
      %16 = sbr.rel target = $region3
    $region8: #{tpu_custom_call.1} parent=1 // loop_exit
      _
    %531 = vsyncpa [#allocation3], 1
    %s532 = scalar_lea.sflag [#allocation3], 1
    %533 = vsyncpa %s532, 1
    %534 = vsyncpa [#allocation5], 1
    %s535 = scalar_lea.sflag [#allocation5], 1
    %536 = vsyncpa %s535, 1

</llo_original>
